<compile_context>
chip_gen: v5e
topology: v5e:2x2
jax: 0.10.0
libtpu: 0.0.40
codegen_flags: <defaults>
</compile_context>

<pallas_src>
import math

import jax
import jax.numpy as jnp
import numpy as np
from jax.experimental import pallas as pl
from jax.experimental.pallas import tpu as pltpu


def _make_embed_kernel(tb, num_fields, embed_dim, vocab):
    """Kernel: gather TB * F embedding rows from the VMEM-resident table."""

    def kernel(ids_ref, emb_ref, out_ref):
        # ids_ref : SMEM (B_pad * F,) int32, already offset-shifted (prefetched)
        # emb_ref : VMEM (V, D) full embedding table (resident across the grid)
        # out_ref : VMEM (TB, F * D) lane-dense output tile
        base = pl.program_id(0) * tb * num_fields
        for r in range(tb):                      # static unroll: TB rows
            for f in range(num_fields):          # static unroll: F fields
                idx = ids_ref[base + r * num_fields + f]
                # Clamp to guard against OOB VMEM reads on bad indices
                # (VMEM loads are not bounds-checked).
                idx = jnp.minimum(jnp.maximum(idx, 0), vocab - 1)
                row = emb_ref[pl.ds(idx, 1), :]                    # (1, D)
                out_ref[r:r + 1, f * embed_dim:(f + 1) * embed_dim] = row

    return kernel


def embedding_layer(x_idx, offsets, emb_table, *, tb=8):
    """x_idx: (B, F) int32, offsets: (F,) int32, emb_table: (V, D) f32."""
    B, F = x_idx.shape
    V, D = emb_table.shape

    # Offset-shift the indices in the wrapper (cheap index plumbing) and
    # flatten so the SMEM scalar-prefetch buffer stays 1-D (no 2-D SMEM
    # padding blowup).
    ids = x_idx.astype(jnp.int32) + offsets.astype(jnp.int32)[None, :]
    n_steps = pl.cdiv(B, tb)
    b_pad = n_steps * tb
    if b_pad != B:
        ids = jnp.pad(ids, ((0, b_pad - B), (0, 0)))   # pad rows -> index 0 (valid)
    ids_flat = ids.reshape(-1)

    # Explicit VMEM budget: resident table + double-buffered output blocks,
    # clamped to a level that is safe on v7x (64 MiB physical VMEM).
    itemsize = jnp.dtype(emb_table.dtype).itemsize
    table_bytes = V * D * itemsize
    out_block_bytes = tb * F * D * itemsize
    needed = table_bytes + 2 * out_block_bytes + (2 << 20)
    vmem_limit = int(min(max(needed, 32 << 20), 48 << 20))
    # TODO(synk): if the table ever exceeds this VMEM budget, fall back to a
    # streamed manual-DMA gather (memory_space=pl.ANY + make_async_copy chain).

    kernel = _make_embed_kernel(tb, F, D, V)

    out_flat = pl.pallas_call(
        kernel,
        grid_spec=pltpu.PrefetchScalarGridSpec(
            num_scalar_prefetch=1,                       # ids_flat -> SMEM
            grid=(n_steps,),
            in_specs=[
                # Whole table, constant block index -> fetched once, resident.
                pl.BlockSpec((V, D), lambda i, ids_ref: (0, 0)),
            ],
            out_specs=pl.BlockSpec((tb, F * D), lambda i, ids_ref: (i, 0)),
        ),
        out_shape=jax.ShapeDtypeStruct((b_pad, F * D), emb_table.dtype),
        compiler_params=pltpu.CompilerParams(
            dimension_semantics=("parallel",),           # shard batch across TCs (v7x)
            vmem_limit_bytes=vmem_limit,
        ),
    )(ids_flat, emb_table)

    return out_flat[:B].reshape(B, F, D)


def make_params(field_dims, embed_dim, gain=1.0, key=jax.random.PRNGKey(0)):
    """Deterministic xavier_uniform-style init of the embedding table."""
    num_embeddings = int(sum(field_dims))
    fan_in, fan_out = embed_dim, num_embeddings
    a = gain * math.sqrt(6.0 / (fan_in + fan_out))
    emb = jax.random.uniform(
        key, (num_embeddings, embed_dim), dtype=jnp.float32, minval=-a, maxval=a
    )
    offsets = np.array((0, *np.cumsum(field_dims)[:-1]), dtype=np.int32)
    return emb, jnp.asarray(offsets)


if __name__ == "__main__":
    field_dims = (3, 5, 7, 9)      # sum = 24 vocabulary rows
    embed_dim = 32                 # F * D = 128 -> lane-dense output rows
    batch = 2
    num_fields = len(field_dims)

    key = jax.random.PRNGKey(0)
    k_emb, k_idx = jax.random.split(key)

    emb_table, offsets = make_params(field_dims, embed_dim, gain=1.0, key=k_emb)

    # Per-field indices, each within its own field cardinality.
    maxes = jnp.asarray(field_dims, dtype=jnp.int32)
    x = (jax.random.randint(k_idx, (batch, num_fields), 0, 1 << 20) % maxes).astype(
        jnp.int32
    )

    out = embedding_layer(x, offsets, emb_table)
    out = jax.block_until_ready(out)

    # Pure-JAX reference check of the gather semantics.
    ref = jnp.take(emb_table, x + offsets[None, :], axis=0)
    assert out.shape == (batch, num_fields, embed_dim)
    np.testing.assert_allclose(np.asarray(out), np.asarray(ref), rtol=0, atol=0)

    print("KERNEL_OK")
</pallas_src>

<mosaic_0001>
module attributes {stable_mosaic.version = 11 : i64} {
  func.func @kernel(%arg0: i32, %arg1: memref<32xi32, #tpu.memory_space<smem>>, %arg2: memref<24x32xf32, #tpu.memory_space<vmem>>, %arg3: memref<8x128xf32, #tpu.memory_space<vmem>>) attributes {dimension_semantics = [#tpu.dimension_semantics<parallel>], iteration_bounds = array<i64: 1>, scalar_prefetch = 1 : i64, scratch_operands = 0 : i64, tpu.core_type = #tpu.core_type<tc>, window_params = [{pipeline_mode = #tpu.pipeline_mode<synchronous>, transform_indices = @transform_0, window_bounds = array<i64: 24, 32>}, {transform_indices = @transform_1, window_bounds = array<i64: 8, 128>}]} {
    %c8_i32 = arith.constant 8 : i32
    %0 = arith.muli %arg0, %c8_i32 : i32
    %c4_i32 = arith.constant 4 : i32
    %1 = arith.muli %0, %c4_i32 : i32
    %c0_i32 = arith.constant 0 : i32
    %2 = arith.addi %1, %c0_i32 : i32
    %c0_i32_0 = arith.constant 0 : i32
    %3 = arith.addi %2, %c0_i32_0 : i32
    %4 = arith.index_cast %3 : i32 to index
    %5 = memref.load %arg1[%4] : memref<32xi32, #tpu.memory_space<smem>>
    %c0_i32_1 = arith.constant 0 : i32
    %6 = arith.maxsi %5, %c0_i32_1 : i32
    %c23_i32 = arith.constant 23 : i32
    %7 = arith.minsi %6, %c23_i32 : i32
    %8 = arith.index_cast %7 : i32 to index
    %c0 = arith.constant 0 : index
    %9 = vector.load %arg2[%8, %c0] : memref<24x32xf32, #tpu.memory_space<vmem>>, vector<1x32xf32>
    %c0_2 = arith.constant 0 : index
    %c0_3 = arith.constant 0 : index
    %10 = vector.load %arg3[%c0_2, %c0_3] : memref<8x128xf32, #tpu.memory_space<vmem>>, vector<1x32xf32>
    tpu.vector_store %arg3[%c0_2, %c0_3], %9 {strides = array<i32>} : memref<8x128xf32, #tpu.memory_space<vmem>>, vector<1x32xf32>,
    %c0_i32_4 = arith.constant 0 : i32
    %11 = arith.addi %1, %c0_i32_4 : i32
    %c1_i32 = arith.constant 1 : i32
    %12 = arith.addi %11, %c1_i32 : i32
    %13 = arith.index_cast %12 : i32 to index
    %14 = memref.load %arg1[%13] : memref<32xi32, #tpu.memory_space<smem>>
    %c0_i32_5 = arith.constant 0 : i32
    %15 = arith.maxsi %14, %c0_i32_5 : i32
    %c23_i32_6 = arith.constant 23 : i32
    %16 = arith.minsi %15, %c23_i32_6 : i32
    %17 = arith.index_cast %16 : i32 to index
    %c0_7 = arith.constant 0 : index
    %18 = vector.load %arg2[%17, %c0_7] : memref<24x32xf32, #tpu.memory_space<vmem>>, vector<1x32xf32>
    %c0_8 = arith.constant 0 : index
    %c32 = arith.constant 32 : index
    %19 = vector.load %arg3[%c0_8, %c32] : memref<8x128xf32, #tpu.memory_space<vmem>>, vector<1x32xf32>
    tpu.vector_store %arg3[%c0_8, %c32], %18 {strides = array<i32>} : memref<8x128xf32, #tpu.memory_space<vmem>>, vector<1x32xf32>,
    %c0_i32_9 = arith.constant 0 : i32
    %20 = arith.addi %1, %c0_i32_9 : i32
    %c2_i32 = arith.constant 2 : i32
    %21 = arith.addi %20, %c2_i32 : i32
    %22 = arith.index_cast %21 : i32 to index
    %23 = memref.load %arg1[%22] : memref<32xi32, #tpu.memory_space<smem>>
    %c0_i32_10 = arith.constant 0 : i32
    %24 = arith.maxsi %23, %c0_i32_10 : i32
    %c23_i32_11 = arith.constant 23 : i32
    %25 = arith.minsi %24, %c23_i32_11 : i32
    %26 = arith.index_cast %25 : i32 to index
    %c0_12 = arith.constant 0 : index
    %27 = vector.load %arg2[%26, %c0_12] : memref<24x32xf32, #tpu.memory_space<vmem>>, vector<1x32xf32>
    %c0_13 = arith.constant 0 : index
    %c64 = arith.constant 64 : index
    %28 = vector.load %arg3[%c0_13, %c64] : memref<8x128xf32, #tpu.memory_space<vmem>>, vector<1x32xf32>
    tpu.vector_store %arg3[%c0_13, %c64], %27 {strides = array<i32>} : memref<8x128xf32, #tpu.memory_space<vmem>>, vector<1x32xf32>,
    %c0_i32_14 = arith.constant 0 : i32
    %29 = arith.addi %1, %c0_i32_14 : i32
    %c3_i32 = arith.constant 3 : i32
    %30 = arith.addi %29, %c3_i32 : i32
    %31 = arith.index_cast %30 : i32 to index
    %32 = memref.load %arg1[%31] : memref<32xi32, #tpu.memory_space<smem>>
    %c0_i32_15 = arith.constant 0 : i32
    %33 = arith.maxsi %32, %c0_i32_15 : i32
    %c23_i32_16 = arith.constant 23 : i32
    %34 = arith.minsi %33, %c23_i32_16 : i32
    %35 = arith.index_cast %34 : i32 to index
    %c0_17 = arith.constant 0 : index
    %36 = vector.load %arg2[%35, %c0_17] : memref<24x32xf32, #tpu.memory_space<vmem>>, vector<1x32xf32>
    %c0_18 = arith.constant 0 : index
    %c96 = arith.constant 96 : index
    %37 = vector.load %arg3[%c0_18, %c96] : memref<8x128xf32, #tpu.memory_space<vmem>>, vector<1x32xf32>
    tpu.vector_store %arg3[%c0_18, %c96], %36 {strides = array<i32>} : memref<8x128xf32, #tpu.memory_space<vmem>>, vector<1x32xf32>,
    %c4_i32_19 = arith.constant 4 : i32
    %38 = arith.addi %1, %c4_i32_19 : i32
    %c0_i32_20 = arith.constant 0 : i32
    %39 = arith.addi %38, %c0_i32_20 : i32
    %40 = arith.index_cast %39 : i32 to index
    %41 = memref.load %arg1[%40] : memref<32xi32, #tpu.memory_space<smem>>
    %c0_i32_21 = arith.constant 0 : i32
    %42 = arith.maxsi %41, %c0_i32_21 : i32
    %c23_i32_22 = arith.constant 23 : i32
    %43 = arith.minsi %42, %c23_i32_22 : i32
    %44 = arith.index_cast %43 : i32 to index
    %c0_23 = arith.constant 0 : index
    %45 = vector.load %arg2[%44, %c0_23] : memref<24x32xf32, #tpu.memory_space<vmem>>, vector<1x32xf32>
    %c1 = arith.constant 1 : index
    %c0_24 = arith.constant 0 : index
    %46 = vector.load %arg3[%c1, %c0_24] : memref<8x128xf32, #tpu.memory_space<vmem>>, vector<1x32xf32>
    tpu.vector_store %arg3[%c1, %c0_24], %45 {strides = array<i32>} : memref<8x128xf32, #tpu.memory_space<vmem>>, vector<1x32xf32>,
    %c4_i32_25 = arith.constant 4 : i32
    %47 = arith.addi %1, %c4_i32_25 : i32
    %c1_i32_26 = arith.constant 1 : i32
    %48 = arith.addi %47, %c1_i32_26 : i32
    %49 = arith.index_cast %48 : i32 to index
    %50 = memref.load %arg1[%49] : memref<32xi32, #tpu.memory_space<smem>>
    %c0_i32_27 = arith.constant 0 : i32
    %51 = arith.maxsi %50, %c0_i32_27 : i32
    %c23_i32_28 = arith.constant 23 : i32
    %52 = arith.minsi %51, %c23_i32_28 : i32
    %53 = arith.index_cast %52 : i32 to index
    %c0_29 = arith.constant 0 : index
    %54 = vector.load %arg2[%53, %c0_29] : memref<24x32xf32, #tpu.memory_space<vmem>>, vector<1x32xf32>
    %c1_30 = arith.constant 1 : index
    %c32_31 = arith.constant 32 : index
    %55 = vector.load %arg3[%c1_30, %c32_31] : memref<8x128xf32, #tpu.memory_space<vmem>>, vector<1x32xf32>
    tpu.vector_store %arg3[%c1_30, %c32_31], %54 {strides = array<i32>} : memref<8x128xf32, #tpu.memory_space<vmem>>, vector<1x32xf32>,
    %c4_i32_32 = arith.constant 4 : i32
    %56 = arith.addi %1, %c4_i32_32 : i32
    %c2_i32_33 = arith.constant 2 : i32
    %57 = arith.addi %56, %c2_i32_33 : i32
    %58 = arith.index_cast %57 : i32 to index
    %59 = memref.load %arg1[%58] : memref<32xi32, #tpu.memory_space<smem>>
    %c0_i32_34 = arith.constant 0 : i32
    %60 = arith.maxsi %59, %c0_i32_34 : i32
    %c23_i32_35 = arith.constant 23 : i32
    %61 = arith.minsi %60, %c23_i32_35 : i32
    %62 = arith.index_cast %61 : i32 to index
    %c0_36 = arith.constant 0 : index
    %63 = vector.load %arg2[%62, %c0_36] : memref<24x32xf32, #tpu.memory_space<vmem>>, vector<1x32xf32>
    %c1_37 = arith.constant 1 : index
    %c64_38 = arith.constant 64 : index
    %64 = vector.load %arg3[%c1_37, %c64_38] : memref<8x128xf32, #tpu.memory_space<vmem>>, vector<1x32xf32>
    tpu.vector_store %arg3[%c1_37, %c64_38], %63 {strides = array<i32>} : memref<8x128xf32, #tpu.memory_space<vmem>>, vector<1x32xf32>,
    %c4_i32_39 = arith.constant 4 : i32
    %65 = arith.addi %1, %c4_i32_39 : i32
    %c3_i32_40 = arith.constant 3 : i32
    %66 = arith.addi %65, %c3_i32_40 : i32
    %67 = arith.index_cast %66 : i32 to index
    %68 = memref.load %arg1[%67] : memref<32xi32, #tpu.memory_space<smem>>
    %c0_i32_41 = arith.constant 0 : i32
    %69 = arith.maxsi %68, %c0_i32_41 : i32
    %c23_i32_42 = arith.constant 23 : i32
    %70 = arith.minsi %69, %c23_i32_42 : i32
    %71 = arith.index_cast %70 : i32 to index
    %c0_43 = arith.constant 0 : index
    %72 = vector.load %arg2[%71, %c0_43] : memref<24x32xf32, #tpu.memory_space<vmem>>, vector<1x32xf32>
    %c1_44 = arith.constant 1 : index
    %c96_45 = arith.constant 96 : index
    %73 = vector.load %arg3[%c1_44, %c96_45] : memref<8x128xf32, #tpu.memory_space<vmem>>, vector<1x32xf32>
    tpu.vector_store %arg3[%c1_44, %c96_45], %72 {strides = array<i32>} : memref<8x128xf32, #tpu.memory_space<vmem>>, vector<1x32xf32>,
    %c8_i32_46 = arith.constant 8 : i32
    %74 = arith.addi %1, %c8_i32_46 : i32
    %c0_i32_47 = arith.constant 0 : i32
    %75 = arith.addi %74, %c0_i32_47 : i32
    %76 = arith.index_cast %75 : i32 to index
    %77 = memref.load %arg1[%76] : memref<32xi32, #tpu.memory_space<smem>>
    %c0_i32_48 = arith.constant 0 : i32
    %78 = arith.maxsi %77, %c0_i32_48 : i32
    %c23_i32_49 = arith.constant 23 : i32
    %79 = arith.minsi %78, %c23_i32_49 : i32
    %80 = arith.index_cast %79 : i32 to index
    %c0_50 = arith.constant 0 : index
    %81 = vector.load %arg2[%80, %c0_50] : memref<24x32xf32, #tpu.memory_space<vmem>>, vector<1x32xf32>
    %c2 = arith.constant 2 : index
    %c0_51 = arith.constant 0 : index
    %82 = vector.load %arg3[%c2, %c0_51] : memref<8x128xf32, #tpu.memory_space<vmem>>, vector<1x32xf32>
    tpu.vector_store %arg3[%c2, %c0_51], %81 {strides = array<i32>} : memref<8x128xf32, #tpu.memory_space<vmem>>, vector<1x32xf32>,
    %c8_i32_52 = arith.constant 8 : i32
    %83 = arith.addi %1, %c8_i32_52 : i32
    %c1_i32_53 = arith.constant 1 : i32
    %84 = arith.addi %83, %c1_i32_53 : i32
    %85 = arith.index_cast %84 : i32 to index
    %86 = memref.load %arg1[%85] : memref<32xi32, #tpu.memory_space<smem>>
    %c0_i32_54 = arith.constant 0 : i32
    %87 = arith.maxsi %86, %c0_i32_54 : i32
    %c23_i32_55 = arith.constant 23 : i32
    %88 = arith.minsi %87, %c23_i32_55 : i32
    %89 = arith.index_cast %88 : i32 to index
    %c0_56 = arith.constant 0 : index
    %90 = vector.load %arg2[%89, %c0_56] : memref<24x32xf32, #tpu.memory_space<vmem>>, vector<1x32xf32>
    %c2_57 = arith.constant 2 : index
    %c32_58 = arith.constant 32 : index
    %91 = vector.load %arg3[%c2_57, %c32_58] : memref<8x128xf32, #tpu.memory_space<vmem>>, vector<1x32xf32>
    tpu.vector_store %arg3[%c2_57, %c32_58], %90 {strides = array<i32>} : memref<8x128xf32, #tpu.memory_space<vmem>>, vector<1x32xf32>,
    %c8_i32_59 = arith.constant 8 : i32
    %92 = arith.addi %1, %c8_i32_59 : i32
    %c2_i32_60 = arith.constant 2 : i32
    %93 = arith.addi %92, %c2_i32_60 : i32
    %94 = arith.index_cast %93 : i32 to index
    %95 = memref.load %arg1[%94] : memref<32xi32, #tpu.memory_space<smem>>
    %c0_i32_61 = arith.constant 0 : i32
    %96 = arith.maxsi %95, %c0_i32_61 : i32
    %c23_i32_62 = arith.constant 23 : i32
    %97 = arith.minsi %96, %c23_i32_62 : i32
    %98 = arith.index_cast %97 : i32 to index
    %c0_63 = arith.constant 0 : index
    %99 = vector.load %arg2[%98, %c0_63] : memref<24x32xf32, #tpu.memory_space<vmem>>, vector<1x32xf32>
    %c2_64 = arith.constant 2 : index
    %c64_65 = arith.constant 64 : index
    %100 = vector.load %arg3[%c2_64, %c64_65] : memref<8x128xf32, #tpu.memory_space<vmem>>, vector<1x32xf32>
    tpu.vector_store %arg3[%c2_64, %c64_65], %99 {strides = array<i32>} : memref<8x128xf32, #tpu.memory_space<vmem>>, vector<1x32xf32>,
    %c8_i32_66 = arith.constant 8 : i32
    %101 = arith.addi %1, %c8_i32_66 : i32
    %c3_i32_67 = arith.constant 3 : i32
    %102 = arith.addi %101, %c3_i32_67 : i32
    %103 = arith.index_cast %102 : i32 to index
    %104 = memref.load %arg1[%103] : memref<32xi32, #tpu.memory_space<smem>>
    %c0_i32_68 = arith.constant 0 : i32
    %105 = arith.maxsi %104, %c0_i32_68 : i32
    %c23_i32_69 = arith.constant 23 : i32
    %106 = arith.minsi %105, %c23_i32_69 : i32
    %107 = arith.index_cast %106 : i32 to index
    %c0_70 = arith.constant 0 : index
    %108 = vector.load %arg2[%107, %c0_70] : memref<24x32xf32, #tpu.memory_space<vmem>>, vector<1x32xf32>
    %c2_71 = arith.constant 2 : index
    %c96_72 = arith.constant 96 : index
    %109 = vector.load %arg3[%c2_71, %c96_72] : memref<8x128xf32, #tpu.memory_space<vmem>>, vector<1x32xf32>
    tpu.vector_store %arg3[%c2_71, %c96_72], %108 {strides = array<i32>} : memref<8x128xf32, #tpu.memory_space<vmem>>, vector<1x32xf32>,
    %c12_i32 = arith.constant 12 : i32
    %110 = arith.addi %1, %c12_i32 : i32
    %c0_i32_73 = arith.constant 0 : i32
    %111 = arith.addi %110, %c0_i32_73 : i32
    %112 = arith.index_cast %111 : i32 to index
    %113 = memref.load %arg1[%112] : memref<32xi32, #tpu.memory_space<smem>>
    %c0_i32_74 = arith.constant 0 : i32
    %114 = arith.maxsi %113, %c0_i32_74 : i32
    %c23_i32_75 = arith.constant 23 : i32
    %115 = arith.minsi %114, %c23_i32_75 : i32
    %116 = arith.index_cast %115 : i32 to index
    %c0_76 = arith.constant 0 : index
    %117 = vector.load %arg2[%116, %c0_76] : memref<24x32xf32, #tpu.memory_space<vmem>>, vector<1x32xf32>
    %c3 = arith.constant 3 : index
    %c0_77 = arith.constant 0 : index
    %118 = vector.load %arg3[%c3, %c0_77] : memref<8x128xf32, #tpu.memory_space<vmem>>, vector<1x32xf32>
    tpu.vector_store %arg3[%c3, %c0_77], %117 {strides = array<i32>} : memref<8x128xf32, #tpu.memory_space<vmem>>, vector<1x32xf32>,
    %c12_i32_78 = arith.constant 12 : i32
    %119 = arith.addi %1, %c12_i32_78 : i32
    %c1_i32_79 = arith.constant 1 : i32
    %120 = arith.addi %119, %c1_i32_79 : i32
    %121 = arith.index_cast %120 : i32 to index
    %122 = memref.load %arg1[%121] : memref<32xi32, #tpu.memory_space<smem>>
    %c0_i32_80 = arith.constant 0 : i32
    %123 = arith.maxsi %122, %c0_i32_80 : i32
    %c23_i32_81 = arith.constant 23 : i32
    %124 = arith.minsi %123, %c23_i32_81 : i32
    %125 = arith.index_cast %124 : i32 to index
    %c0_82 = arith.constant 0 : index
    %126 = vector.load %arg2[%125, %c0_82] : memref<24x32xf32, #tpu.memory_space<vmem>>, vector<1x32xf32>
    %c3_83 = arith.constant 3 : index
    %c32_84 = arith.constant 32 : index
    %127 = vector.load %arg3[%c3_83, %c32_84] : memref<8x128xf32, #tpu.memory_space<vmem>>, vector<1x32xf32>
    tpu.vector_store %arg3[%c3_83, %c32_84], %126 {strides = array<i32>} : memref<8x128xf32, #tpu.memory_space<vmem>>, vector<1x32xf32>,
    %c12_i32_85 = arith.constant 12 : i32
    %128 = arith.addi %1, %c12_i32_85 : i32
    %c2_i32_86 = arith.constant 2 : i32
    %129 = arith.addi %128, %c2_i32_86 : i32
    %130 = arith.index_cast %129 : i32 to index
    %131 = memref.load %arg1[%130] : memref<32xi32, #tpu.memory_space<smem>>
    %c0_i32_87 = arith.constant 0 : i32
    %132 = arith.maxsi %131, %c0_i32_87 : i32
    %c23_i32_88 = arith.constant 23 : i32
    %133 = arith.minsi %132, %c23_i32_88 : i32
    %134 = arith.index_cast %133 : i32 to index
    %c0_89 = arith.constant 0 : index
    %135 = vector.load %arg2[%134, %c0_89] : memref<24x32xf32, #tpu.memory_space<vmem>>, vector<1x32xf32>
    %c3_90 = arith.constant 3 : index
    %c64_91 = arith.constant 64 : index
    %136 = vector.load %arg3[%c3_90, %c64_91] : memref<8x128xf32, #tpu.memory_space<vmem>>, vector<1x32xf32>
    tpu.vector_store %arg3[%c3_90, %c64_91], %135 {strides = array<i32>} : memref<8x128xf32, #tpu.memory_space<vmem>>, vector<1x32xf32>,
    %c12_i32_92 = arith.constant 12 : i32
    %137 = arith.addi %1, %c12_i32_92 : i32
    %c3_i32_93 = arith.constant 3 : i32
    %138 = arith.addi %137, %c3_i32_93 : i32
    %139 = arith.index_cast %138 : i32 to index
    %140 = memref.load %arg1[%139] : memref<32xi32, #tpu.memory_space<smem>>
    %c0_i32_94 = arith.constant 0 : i32
    %141 = arith.maxsi %140, %c0_i32_94 : i32
    %c23_i32_95 = arith.constant 23 : i32
    %142 = arith.minsi %141, %c23_i32_95 : i32
    %143 = arith.index_cast %142 : i32 to index
    %c0_96 = arith.constant 0 : index
    %144 = vector.load %arg2[%143, %c0_96] : memref<24x32xf32, #tpu.memory_space<vmem>>, vector<1x32xf32>
    %c3_97 = arith.constant 3 : index
    %c96_98 = arith.constant 96 : index
    %145 = vector.load %arg3[%c3_97, %c96_98] : memref<8x128xf32, #tpu.memory_space<vmem>>, vector<1x32xf32>
    tpu.vector_store %arg3[%c3_97, %c96_98], %144 {strides = array<i32>} : memref<8x128xf32, #tpu.memory_space<vmem>>, vector<1x32xf32>,
    %c16_i32 = arith.constant 16 : i32
    %146 = arith.addi %1, %c16_i32 : i32
    %c0_i32_99 = arith.constant 0 : i32
    %147 = arith.addi %146, %c0_i32_99 : i32
    %148 = arith.index_cast %147 : i32 to index
    %149 = memref.load %arg1[%148] : memref<32xi32, #tpu.memory_space<smem>>
    %c0_i32_100 = arith.constant 0 : i32
    %150 = arith.maxsi %149, %c0_i32_100 : i32
    %c23_i32_101 = arith.constant 23 : i32
    %151 = arith.minsi %150, %c23_i32_101 : i32
    %152 = arith.index_cast %151 : i32 to index
    %c0_102 = arith.constant 0 : index
    %153 = vector.load %arg2[%152, %c0_102] : memref<24x32xf32, #tpu.memory_space<vmem>>, vector<1x32xf32>
    %c4 = arith.constant 4 : index
    %c0_103 = arith.constant 0 : index
    %154 = vector.load %arg3[%c4, %c0_103] : memref<8x128xf32, #tpu.memory_space<vmem>>, vector<1x32xf32>
    tpu.vector_store %arg3[%c4, %c0_103], %153 {strides = array<i32>} : memref<8x128xf32, #tpu.memory_space<vmem>>, vector<1x32xf32>,
    %c16_i32_104 = arith.constant 16 : i32
    %155 = arith.addi %1, %c16_i32_104 : i32
    %c1_i32_105 = arith.constant 1 : i32
    %156 = arith.addi %155, %c1_i32_105 : i32
    %157 = arith.index_cast %156 : i32 to index
    %158 = memref.load %arg1[%157] : memref<32xi32, #tpu.memory_space<smem>>
    %c0_i32_106 = arith.constant 0 : i32
    %159 = arith.maxsi %158, %c0_i32_106 : i32
    %c23_i32_107 = arith.constant 23 : i32
    %160 = arith.minsi %159, %c23_i32_107 : i32
    %161 = arith.index_cast %160 : i32 to index
    %c0_108 = arith.constant 0 : index
    %162 = vector.load %arg2[%161, %c0_108] : memref<24x32xf32, #tpu.memory_space<vmem>>, vector<1x32xf32>
    %c4_109 = arith.constant 4 : index
    %c32_110 = arith.constant 32 : index
    %163 = vector.load %arg3[%c4_109, %c32_110] : memref<8x128xf32, #tpu.memory_space<vmem>>, vector<1x32xf32>
    tpu.vector_store %arg3[%c4_109, %c32_110], %162 {strides = array<i32>} : memref<8x128xf32, #tpu.memory_space<vmem>>, vector<1x32xf32>,
    %c16_i32_111 = arith.constant 16 : i32
    %164 = arith.addi %1, %c16_i32_111 : i32
    %c2_i32_112 = arith.constant 2 : i32
    %165 = arith.addi %164, %c2_i32_112 : i32
    %166 = arith.index_cast %165 : i32 to index
    %167 = memref.load %arg1[%166] : memref<32xi32, #tpu.memory_space<smem>>
    %c0_i32_113 = arith.constant 0 : i32
    %168 = arith.maxsi %167, %c0_i32_113 : i32
    %c23_i32_114 = arith.constant 23 : i32
    %169 = arith.minsi %168, %c23_i32_114 : i32
    %170 = arith.index_cast %169 : i32 to index
    %c0_115 = arith.constant 0 : index
    %171 = vector.load %arg2[%170, %c0_115] : memref<24x32xf32, #tpu.memory_space<vmem>>, vector<1x32xf32>
    %c4_116 = arith.constant 4 : index
    %c64_117 = arith.constant 64 : index
    %172 = vector.load %arg3[%c4_116, %c64_117] : memref<8x128xf32, #tpu.memory_space<vmem>>, vector<1x32xf32>
    tpu.vector_store %arg3[%c4_116, %c64_117], %171 {strides = array<i32>} : memref<8x128xf32, #tpu.memory_space<vmem>>, vector<1x32xf32>,
    %c16_i32_118 = arith.constant 16 : i32
    %173 = arith.addi %1, %c16_i32_118 : i32
    %c3_i32_119 = arith.constant 3 : i32
    %174 = arith.addi %173, %c3_i32_119 : i32
    %175 = arith.index_cast %174 : i32 to index
    %176 = memref.load %arg1[%175] : memref<32xi32, #tpu.memory_space<smem>>
    %c0_i32_120 = arith.constant 0 : i32
    %177 = arith.maxsi %176, %c0_i32_120 : i32
    %c23_i32_121 = arith.constant 23 : i32
    %178 = arith.minsi %177, %c23_i32_121 : i32
    %179 = arith.index_cast %178 : i32 to index
    %c0_122 = arith.constant 0 : index
    %180 = vector.load %arg2[%179, %c0_122] : memref<24x32xf32, #tpu.memory_space<vmem>>, vector<1x32xf32>
    %c4_123 = arith.constant 4 : index
    %c96_124 = arith.constant 96 : index
    %181 = vector.load %arg3[%c4_123, %c96_124] : memref<8x128xf32, #tpu.memory_space<vmem>>, vector<1x32xf32>
    tpu.vector_store %arg3[%c4_123, %c96_124], %180 {strides = array<i32>} : memref<8x128xf32, #tpu.memory_space<vmem>>, vector<1x32xf32>,
    %c20_i32 = arith.constant 20 : i32
    %182 = arith.addi %1, %c20_i32 : i32
    %c0_i32_125 = arith.constant 0 : i32
    %183 = arith.addi %182, %c0_i32_125 : i32
    %184 = arith.index_cast %183 : i32 to index
    %185 = memref.load %arg1[%184] : memref<32xi32, #tpu.memory_space<smem>>
    %c0_i32_126 = arith.constant 0 : i32
    %186 = arith.maxsi %185, %c0_i32_126 : i32
    %c23_i32_127 = arith.constant 23 : i32
    %187 = arith.minsi %186, %c23_i32_127 : i32
    %188 = arith.index_cast %187 : i32 to index
    %c0_128 = arith.constant 0 : index
    %189 = vector.load %arg2[%188, %c0_128] : memref<24x32xf32, #tpu.memory_space<vmem>>, vector<1x32xf32>
    %c5 = arith.constant 5 : index
    %c0_129 = arith.constant 0 : index
    %190 = vector.load %arg3[%c5, %c0_129] : memref<8x128xf32, #tpu.memory_space<vmem>>, vector<1x32xf32>
    tpu.vector_store %arg3[%c5, %c0_129], %189 {strides = array<i32>} : memref<8x128xf32, #tpu.memory_space<vmem>>, vector<1x32xf32>,
    %c20_i32_130 = arith.constant 20 : i32
    %191 = arith.addi %1, %c20_i32_130 : i32
    %c1_i32_131 = arith.constant 1 : i32
    %192 = arith.addi %191, %c1_i32_131 : i32
    %193 = arith.index_cast %192 : i32 to index
    %194 = memref.load %arg1[%193] : memref<32xi32, #tpu.memory_space<smem>>
    %c0_i32_132 = arith.constant 0 : i32
    %195 = arith.maxsi %194, %c0_i32_132 : i32
    %c23_i32_133 = arith.constant 23 : i32
    %196 = arith.minsi %195, %c23_i32_133 : i32
    %197 = arith.index_cast %196 : i32 to index
    %c0_134 = arith.constant 0 : index
    %198 = vector.load %arg2[%197, %c0_134] : memref<24x32xf32, #tpu.memory_space<vmem>>, vector<1x32xf32>
    %c5_135 = arith.constant 5 : index
    %c32_136 = arith.constant 32 : index
    %199 = vector.load %arg3[%c5_135, %c32_136] : memref<8x128xf32, #tpu.memory_space<vmem>>, vector<1x32xf32>
    tpu.vector_store %arg3[%c5_135, %c32_136], %198 {strides = array<i32>} : memref<8x128xf32, #tpu.memory_space<vmem>>, vector<1x32xf32>,
    %c20_i32_137 = arith.constant 20 : i32
    %200 = arith.addi %1, %c20_i32_137 : i32
    %c2_i32_138 = arith.constant 2 : i32
    %201 = arith.addi %200, %c2_i32_138 : i32
    %202 = arith.index_cast %201 : i32 to index
    %203 = memref.load %arg1[%202] : memref<32xi32, #tpu.memory_space<smem>>
    %c0_i32_139 = arith.constant 0 : i32
    %204 = arith.maxsi %203, %c0_i32_139 : i32
    %c23_i32_140 = arith.constant 23 : i32
    %205 = arith.minsi %204, %c23_i32_140 : i32
    %206 = arith.index_cast %205 : i32 to index
    %c0_141 = arith.constant 0 : index
    %207 = vector.load %arg2[%206, %c0_141] : memref<24x32xf32, #tpu.memory_space<vmem>>, vector<1x32xf32>
    %c5_142 = arith.constant 5 : index
    %c64_143 = arith.constant 64 : index
    %208 = vector.load %arg3[%c5_142, %c64_143] : memref<8x128xf32, #tpu.memory_space<vmem>>, vector<1x32xf32>
    tpu.vector_store %arg3[%c5_142, %c64_143], %207 {strides = array<i32>} : memref<8x128xf32, #tpu.memory_space<vmem>>, vector<1x32xf32>,
    %c20_i32_144 = arith.constant 20 : i32
    %209 = arith.addi %1, %c20_i32_144 : i32
    %c3_i32_145 = arith.constant 3 : i32
    %210 = arith.addi %209, %c3_i32_145 : i32
    %211 = arith.index_cast %210 : i32 to index
    %212 = memref.load %arg1[%211] : memref<32xi32, #tpu.memory_space<smem>>
    %c0_i32_146 = arith.constant 0 : i32
    %213 = arith.maxsi %212, %c0_i32_146 : i32
    %c23_i32_147 = arith.constant 23 : i32
    %214 = arith.minsi %213, %c23_i32_147 : i32
    %215 = arith.index_cast %214 : i32 to index
    %c0_148 = arith.constant 0 : index
    %216 = vector.load %arg2[%215, %c0_148] : memref<24x32xf32, #tpu.memory_space<vmem>>, vector<1x32xf32>
    %c5_149 = arith.constant 5 : index
    %c96_150 = arith.constant 96 : index
    %217 = vector.load %arg3[%c5_149, %c96_150] : memref<8x128xf32, #tpu.memory_space<vmem>>, vector<1x32xf32>
    tpu.vector_store %arg3[%c5_149, %c96_150], %216 {strides = array<i32>} : memref<8x128xf32, #tpu.memory_space<vmem>>, vector<1x32xf32>,
    %c24_i32 = arith.constant 24 : i32
    %218 = arith.addi %1, %c24_i32 : i32
    %c0_i32_151 = arith.constant 0 : i32
    %219 = arith.addi %218, %c0_i32_151 : i32
    %220 = arith.index_cast %219 : i32 to index
    %221 = memref.load %arg1[%220] : memref<32xi32, #tpu.memory_space<smem>>
    %c0_i32_152 = arith.constant 0 : i32
    %222 = arith.maxsi %221, %c0_i32_152 : i32
    %c23_i32_153 = arith.constant 23 : i32
    %223 = arith.minsi %222, %c23_i32_153 : i32
    %224 = arith.index_cast %223 : i32 to index
    %c0_154 = arith.constant 0 : index
    %225 = vector.load %arg2[%224, %c0_154] : memref<24x32xf32, #tpu.memory_space<vmem>>, vector<1x32xf32>
    %c6 = arith.constant 6 : index
    %c0_155 = arith.constant 0 : index
    %226 = vector.load %arg3[%c6, %c0_155] : memref<8x128xf32, #tpu.memory_space<vmem>>, vector<1x32xf32>
    tpu.vector_store %arg3[%c6, %c0_155], %225 {strides = array<i32>} : memref<8x128xf32, #tpu.memory_space<vmem>>, vector<1x32xf32>,
    %c24_i32_156 = arith.constant 24 : i32
    %227 = arith.addi %1, %c24_i32_156 : i32
    %c1_i32_157 = arith.constant 1 : i32
    %228 = arith.addi %227, %c1_i32_157 : i32
    %229 = arith.index_cast %228 : i32 to index
    %230 = memref.load %arg1[%229] : memref<32xi32, #tpu.memory_space<smem>>
    %c0_i32_158 = arith.constant 0 : i32
    %231 = arith.maxsi %230, %c0_i32_158 : i32
    %c23_i32_159 = arith.constant 23 : i32
    %232 = arith.minsi %231, %c23_i32_159 : i32
    %233 = arith.index_cast %232 : i32 to index
    %c0_160 = arith.constant 0 : index
    %234 = vector.load %arg2[%233, %c0_160] : memref<24x32xf32, #tpu.memory_space<vmem>>, vector<1x32xf32>
    %c6_161 = arith.constant 6 : index
    %c32_162 = arith.constant 32 : index
    %235 = vector.load %arg3[%c6_161, %c32_162] : memref<8x128xf32, #tpu.memory_space<vmem>>, vector<1x32xf32>
    tpu.vector_store %arg3[%c6_161, %c32_162], %234 {strides = array<i32>} : memref<8x128xf32, #tpu.memory_space<vmem>>, vector<1x32xf32>,
    %c24_i32_163 = arith.constant 24 : i32
    %236 = arith.addi %1, %c24_i32_163 : i32
    %c2_i32_164 = arith.constant 2 : i32
    %237 = arith.addi %236, %c2_i32_164 : i32
    %238 = arith.index_cast %237 : i32 to index
    %239 = memref.load %arg1[%238] : memref<32xi32, #tpu.memory_space<smem>>
    %c0_i32_165 = arith.constant 0 : i32
    %240 = arith.maxsi %239, %c0_i32_165 : i32
    %c23_i32_166 = arith.constant 23 : i32
    %241 = arith.minsi %240, %c23_i32_166 : i32
    %242 = arith.index_cast %241 : i32 to index
    %c0_167 = arith.constant 0 : index
    %243 = vector.load %arg2[%242, %c0_167] : memref<24x32xf32, #tpu.memory_space<vmem>>, vector<1x32xf32>
    %c6_168 = arith.constant 6 : index
    %c64_169 = arith.constant 64 : index
    %244 = vector.load %arg3[%c6_168, %c64_169] : memref<8x128xf32, #tpu.memory_space<vmem>>, vector<1x32xf32>
    tpu.vector_store %arg3[%c6_168, %c64_169], %243 {strides = array<i32>} : memref<8x128xf32, #tpu.memory_space<vmem>>, vector<1x32xf32>,
    %c24_i32_170 = arith.constant 24 : i32
    %245 = arith.addi %1, %c24_i32_170 : i32
    %c3_i32_171 = arith.constant 3 : i32
    %246 = arith.addi %245, %c3_i32_171 : i32
    %247 = arith.index_cast %246 : i32 to index
    %248 = memref.load %arg1[%247] : memref<32xi32, #tpu.memory_space<smem>>
    %c0_i32_172 = arith.constant 0 : i32
    %249 = arith.maxsi %248, %c0_i32_172 : i32
    %c23_i32_173 = arith.constant 23 : i32
    %250 = arith.minsi %249, %c23_i32_173 : i32
    %251 = arith.index_cast %250 : i32 to index
    %c0_174 = arith.constant 0 : index
    %252 = vector.load %arg2[%251, %c0_174] : memref<24x32xf32, #tpu.memory_space<vmem>>, vector<1x32xf32>
    %c6_175 = arith.constant 6 : index
    %c96_176 = arith.constant 96 : index
    %253 = vector.load %arg3[%c6_175, %c96_176] : memref<8x128xf32, #tpu.memory_space<vmem>>, vector<1x32xf32>
    tpu.vector_store %arg3[%c6_175, %c96_176], %252 {strides = array<i32>} : memref<8x128xf32, #tpu.memory_space<vmem>>, vector<1x32xf32>,
    %c28_i32 = arith.constant 28 : i32
    %254 = arith.addi %1, %c28_i32 : i32
    %c0_i32_177 = arith.constant 0 : i32
    %255 = arith.addi %254, %c0_i32_177 : i32
    %256 = arith.index_cast %255 : i32 to index
    %257 = memref.load %arg1[%256] : memref<32xi32, #tpu.memory_space<smem>>
    %c0_i32_178 = arith.constant 0 : i32
    %258 = arith.maxsi %257, %c0_i32_178 : i32
    %c23_i32_179 = arith.constant 23 : i32
    %259 = arith.minsi %258, %c23_i32_179 : i32
    %260 = arith.index_cast %259 : i32 to index
    %c0_180 = arith.constant 0 : index
    %261 = vector.load %arg2[%260, %c0_180] : memref<24x32xf32, #tpu.memory_space<vmem>>, vector<1x32xf32>
    %c7 = arith.constant 7 : index
    %c0_181 = arith.constant 0 : index
    %262 = vector.load %arg3[%c7, %c0_181] : memref<8x128xf32, #tpu.memory_space<vmem>>, vector<1x32xf32>
    tpu.vector_store %arg3[%c7, %c0_181], %261 {strides = array<i32>} : memref<8x128xf32, #tpu.memory_space<vmem>>, vector<1x32xf32>,
    %c28_i32_182 = arith.constant 28 : i32
    %263 = arith.addi %1, %c28_i32_182 : i32
    %c1_i32_183 = arith.constant 1 : i32
    %264 = arith.addi %263, %c1_i32_183 : i32
    %265 = arith.index_cast %264 : i32 to index
    %266 = memref.load %arg1[%265] : memref<32xi32, #tpu.memory_space<smem>>
    %c0_i32_184 = arith.constant 0 : i32
    %267 = arith.maxsi %266, %c0_i32_184 : i32
    %c23_i32_185 = arith.constant 23 : i32
    %268 = arith.minsi %267, %c23_i32_185 : i32
    %269 = arith.index_cast %268 : i32 to index
    %c0_186 = arith.constant 0 : index
    %270 = vector.load %arg2[%269, %c0_186] : memref<24x32xf32, #tpu.memory_space<vmem>>, vector<1x32xf32>
    %c7_187 = arith.constant 7 : index
    %c32_188 = arith.constant 32 : index
    %271 = vector.load %arg3[%c7_187, %c32_188] : memref<8x128xf32, #tpu.memory_space<vmem>>, vector<1x32xf32>
    tpu.vector_store %arg3[%c7_187, %c32_188], %270 {strides = array<i32>} : memref<8x128xf32, #tpu.memory_space<vmem>>, vector<1x32xf32>,
    %c28_i32_189 = arith.constant 28 : i32
    %272 = arith.addi %1, %c28_i32_189 : i32
    %c2_i32_190 = arith.constant 2 : i32
    %273 = arith.addi %272, %c2_i32_190 : i32
    %274 = arith.index_cast %273 : i32 to index
    %275 = memref.load %arg1[%274] : memref<32xi32, #tpu.memory_space<smem>>
    %c0_i32_191 = arith.constant 0 : i32
    %276 = arith.maxsi %275, %c0_i32_191 : i32
    %c23_i32_192 = arith.constant 23 : i32
    %277 = arith.minsi %276, %c23_i32_192 : i32
    %278 = arith.index_cast %277 : i32 to index
    %c0_193 = arith.constant 0 : index
    %279 = vector.load %arg2[%278, %c0_193] : memref<24x32xf32, #tpu.memory_space<vmem>>, vector<1x32xf32>
    %c7_194 = arith.constant 7 : index
    %c64_195 = arith.constant 64 : index
    %280 = vector.load %arg3[%c7_194, %c64_195] : memref<8x128xf32, #tpu.memory_space<vmem>>, vector<1x32xf32>
    tpu.vector_store %arg3[%c7_194, %c64_195], %279 {strides = array<i32>} : memref<8x128xf32, #tpu.memory_space<vmem>>, vector<1x32xf32>,
    %c28_i32_196 = arith.constant 28 : i32
    %281 = arith.addi %1, %c28_i32_196 : i32
    %c3_i32_197 = arith.constant 3 : i32
    %282 = arith.addi %281, %c3_i32_197 : i32
    %283 = arith.index_cast %282 : i32 to index
    %284 = memref.load %arg1[%283] : memref<32xi32, #tpu.memory_space<smem>>
    %c0_i32_198 = arith.constant 0 : i32
    %285 = arith.maxsi %284, %c0_i32_198 : i32
    %c23_i32_199 = arith.constant 23 : i32
    %286 = arith.minsi %285, %c23_i32_199 : i32
    %287 = arith.index_cast %286 : i32 to index
    %c0_200 = arith.constant 0 : index
    %288 = vector.load %arg2[%287, %c0_200] : memref<24x32xf32, #tpu.memory_space<vmem>>, vector<1x32xf32>
    %c7_201 = arith.constant 7 : index
    %c96_202 = arith.constant 96 : index
    %289 = vector.load %arg3[%c7_201, %c96_202] : memref<8x128xf32, #tpu.memory_space<vmem>>, vector<1x32xf32>
    tpu.vector_store %arg3[%c7_201, %c96_202], %288 {strides = array<i32>} : memref<8x128xf32, #tpu.memory_space<vmem>>, vector<1x32xf32>,
    return
  }
  func.func @transform_0(%arg0: i32, %arg1: memref<32xi32, #tpu.memory_space<smem>>) -> (i32, i32) {
    %c0_i32 = arith.constant 0 : i32
    %c0_i32_0 = arith.constant 0 : i32
    %c0_i32_1 = arith.constant 0 : i32
    return %c0_i32, %c0_i32_0 : i32, i32
  }
  func.func @transform_1(%arg0: i32, %arg1: memref<32xi32, #tpu.memory_space<smem>>) -> (i32, i32) {
    %c0_i32 = arith.constant 0 : i32
    %c0_i32_0 = arith.constant 0 : i32
    return %arg0, %c0_i32 : i32, i32
  }
}

</mosaic_0001>

<llo_original>
// kernel: tpu_custom_call.1
$region0: #{tpu_custom_call.1}
  #allocation0 [shape = 'u32[]', space=smem, size = 0x4, offset = 0x4, fixed_abs, tag = 'smem constant byte address 0x4 - core index']
  #allocation1 [shape = 'u32[72,128]{1,0:T(1,128)}', space=vmem, size = 0x9000, scoped, tag = 'internal scratch']
  #allocation2 [shape = 's32[1]{0}', space=sflag, size = 0x4, scoped, tag = 'scoped memory for tpu_custom_call.1']
  #allocation3 [shape = 'u8[512]{0}', space=smem, size = 0x200, scoped, tag = 'prefetched SMEM operand 0']
  %s0 = inlined_call_operand.hbm [shape: s32[32], index: 0, kind: input, shape index: {}]
  %s1 = inlined_call_operand.hbm [shape: f32[24,32], index: 1, kind: input, shape index: {}]
  %s2 = inlined_call_operand.hbm [shape: f32[8,128], index: 2, kind: output, shape index: {}]
  %s3 = sld [smem:[#allocation0]]
  $region18: #{tpu_custom_call.1} parent=0
    _
  %s5 = ssub.s32 1, %s3
  %s6 = scalar_select 0, %s5, %s3
  %s8 = sshll.u32 %s0, 4
  %s9 = int_to_ptr.hbm [resolvable:$true] %s8
  %11 = dma.hbm_to_smem %s9, 16, [#allocation3], [#allocation2]
  %13 = dma.done [#allocation2], 16
  %14 = sfence
  $region1: #{tpu_custom_call.1} parent=0
    #allocation4 [shape = 'u8[12288]{0}', space=vmem, size = 0x3000, scoped, tag = 'input window, operand 1, single buffered']
    #allocation5 [shape = 's32[1]{0}', space=sflag, size = 0x4, scoped, tag = 'scoped memory for tpu_custom_call.1']
    #allocation6 [shape = 's32[1]{0}', space=sflag, size = 0x4, scoped, tag = 'scoped memory for tpu_custom_call.1']
    #allocation7 [shape = 'u8[4096]{0}', space=vmem, size = 0x1000, scoped, tag = 'output window, operand 0, single buffered']
    %15 = vsyncpa [#allocation5], 0
    %16 = vsyncpa [#allocation6], 0
    // Predicated region
    $region2: #{tpu_custom_call.1} parent=1 // pred_check
      _
    $region3: #{tpu_custom_call.1} parent=1 // pred_check_branch
      %18 = sbr.rel (0) target = $region5
    $region4: #{tpu_custom_call.1} parent=1 // pred_region
      %20 = vsyncadd [#allocation5], 0
      %s21 = sshll.u32 %s1, 4
      %s22 = int_to_ptr.hbm [resolvable:$true] %s21
      %s23 = sshll.u32 [#allocation4], 4
      %s24 = int_to_ptr.vmem [resolvable:$true] %s23
      %29 = dma.hbm_to_vmem [thread:$0]  %s22, 384, %s24, [#allocation5], 128, 128, 8
    $region5: #{tpu_custom_call.1} parent=1 // pred_fallthru
      _
    // Predicated region
    $region6: #{tpu_custom_call.1} parent=1 // pred_check
      _
    $region7: #{tpu_custom_call.1} parent=1 // pred_check_branch
      %31 = sbr.rel (0) target = $region9
    $region8: #{tpu_custom_call.1} parent=1 // pred_region
      %33 = dma.done [#allocation5], 384
    $region9: #{tpu_custom_call.1} parent=1 // pred_fallthru
      _
    %s34 = smul.u32 0, 32
    %s35 = sld [smem:[#allocation3 + %s34]]
    %p36 = scmp.gt.s32.totalorder %s35, 0
    %s37 = scalar_select %p36, %s35, 0
    %p38 = scmp.lt.s32.totalorder %s37, 23
    %s39 = scalar_select %p38, %s37, 23
    %s40 = scalar_lea.vmem [#allocation4], %s39
    %v41 = vld [vmem:[%s40] sm:$0x1]
    %vm42 = vcmask 253952
    %43 = vst.msk [vmem:[#allocation7] sm:$0x1] %vm42, %v41
    %s44 = sadd.s32 %s34, 1
    %s45 = sld [smem:[#allocation3 + %s44]]
    %p46 = scmp.gt.s32.totalorder %s45, 0
    %s47 = scalar_select %p46, %s45, 0
    %p48 = scmp.lt.s32.totalorder %s47, 23
    %s49 = scalar_select %p48, %s47, 23
    %s50 = scalar_lea.vmem [#allocation4], %s49
    %v51 = vld [vmem:[%s50] sm:$0x1]
    %53 = vrot.lane.b32.xlu0 %v51, 32
    %v54 = vpop.permute.xlu0 %53
    %vm56 = vcmask 516352
    %57 = vst.msk [vmem:[#allocation7] sm:$0x1] %vm56, %v54
    %s58 = sadd.s32 %s34, 2
    %s59 = sld [smem:[#allocation3 + %s58]]
    %p60 = scmp.gt.s32.totalorder %s59, 0
    %s61 = scalar_select %p60, %s59, 0
    %p62 = scmp.lt.s32.totalorder %s61, 23
    %s63 = scalar_select %p62, %s61, 23
    %s64 = scalar_lea.vmem [#allocation4], %s63
    %v65 = vld [vmem:[%s64] sm:$0x1]
    %67 = vrot.lane.b32.xlu0 %v65, 64
    %v68 = vpop.permute.xlu0 %67
    %vm70 = vcmask 778752
    %71 = vst.msk [vmem:[#allocation7] sm:$0x1] %vm70, %v68
    %s72 = sadd.s32 %s34, 3
    %s73 = sld [smem:[#allocation3 + %s72]]
    %p74 = scmp.gt.s32.totalorder %s73, 0
    %s75 = scalar_select %p74, %s73, 0
    %p76 = scmp.lt.s32.totalorder %s75, 23
    %s77 = scalar_select %p76, %s75, 23
    %s78 = scalar_lea.vmem [#allocation4], %s77
    %v79 = vld [vmem:[%s78] sm:$0x1]
    %81 = vrot.lane.b32.xlu0 %v79, 96
    %v82 = vpop.permute.xlu0 %81
    %vm84 = vcmask 1041152
    %85 = vst.msk [vmem:[#allocation7] sm:$0x1] %vm84, %v82
    %s86 = sadd.s32 %s34, 4
    %s87 = sld [smem:[#allocation3 + %s86]]
    %p88 = scmp.gt.s32.totalorder %s87, 0
    %s89 = scalar_select %p88, %s87, 0
    %p90 = scmp.lt.s32.totalorder %s89, 23
    %s91 = scalar_select %p90, %s89, 23
    %s92 = scalar_lea.vmem [#allocation4], %s91
    %v93 = vld [vmem:[%s92] sm:$0x1]
    %94 = vst.msk [vmem:[#allocation7 + $0x1] sm:$0x1] %vm42, %v93
    %s95 = sadd.s32 %s34, 5
    %s96 = sld [smem:[#allocation3 + %s95]]
    %p97 = scmp.gt.s32.totalorder %s96, 0
    %s98 = scalar_select %p97, %s96, 0
    %p99 = scmp.lt.s32.totalorder %s98, 23
    %s100 = scalar_select %p99, %s98, 23
    %s101 = scalar_lea.vmem [#allocation4], %s100
    %v102 = vld [vmem:[%s101] sm:$0x1]
    %104 = vrot.lane.b32.xlu0 %v102, 32
    %v105 = vpop.permute.xlu0 %104
    %107 = vst.msk [vmem:[#allocation7 + $0x1] sm:$0x1] %vm56, %v105
    %s108 = sadd.s32 %s34, 6
    %s109 = sld [smem:[#allocation3 + %s108]]
    %p110 = scmp.gt.s32.totalorder %s109, 0
    %s111 = scalar_select %p110, %s109, 0
    %p112 = scmp.lt.s32.totalorder %s111, 23
    %s113 = scalar_select %p112, %s111, 23
    %s114 = scalar_lea.vmem [#allocation4], %s113
    %v115 = vld [vmem:[%s114] sm:$0x1]
    %117 = vrot.lane.b32.xlu0 %v115, 64
    %v118 = vpop.permute.xlu0 %117
    %120 = vst.msk [vmem:[#allocation7 + $0x1] sm:$0x1] %vm70, %v118
    %s121 = sadd.s32 %s34, 7
    %s122 = sld [smem:[#allocation3 + %s121]]
    %p123 = scmp.gt.s32.totalorder %s122, 0
    %s124 = scalar_select %p123, %s122, 0
    %p125 = scmp.lt.s32.totalorder %s124, 23
    %s126 = scalar_select %p125, %s124, 23
    %s127 = scalar_lea.vmem [#allocation4], %s126
    %v128 = vld [vmem:[%s127] sm:$0x1]
    %130 = vrot.lane.b32.xlu0 %v128, 96
    %v131 = vpop.permute.xlu0 %130
    %133 = vst.msk [vmem:[#allocation7 + $0x1] sm:$0x1] %vm84, %v131
    %s134 = sadd.s32 %s34, 8
    %s135 = sld [smem:[#allocation3 + %s134]]
    %p136 = scmp.gt.s32.totalorder %s135, 0
    %s137 = scalar_select %p136, %s135, 0
    %p138 = scmp.lt.s32.totalorder %s137, 23
    %s139 = scalar_select %p138, %s137, 23
    %s140 = scalar_lea.vmem [#allocation4], %s139
    %v141 = vld [vmem:[%s140] sm:$0x1]
    %142 = vst.msk [vmem:[#allocation7 + $0x2] sm:$0x1] %vm42, %v141
    %s143 = sadd.s32 %s34, 9
    %s144 = sld [smem:[#allocation3 + %s143]]
    %p145 = scmp.gt.s32.totalorder %s144, 0
    %s146 = scalar_select %p145, %s144, 0
    %p147 = scmp.lt.s32.totalorder %s146, 23
    %s148 = scalar_select %p147, %s146, 23
    %s149 = scalar_lea.vmem [#allocation4], %s148
    %v150 = vld [vmem:[%s149] sm:$0x1]
    %152 = vrot.lane.b32.xlu0 %v150, 32
    %v153 = vpop.permute.xlu0 %152
    %155 = vst.msk [vmem:[#allocation7 + $0x2] sm:$0x1] %vm56, %v153
    %s156 = sadd.s32 %s34, 10
    %s157 = sld [smem:[#allocation3 + %s156]]
    %p158 = scmp.gt.s32.totalorder %s157, 0
    %s159 = scalar_select %p158, %s157, 0
    %p160 = scmp.lt.s32.totalorder %s159, 23
    %s161 = scalar_select %p160, %s159, 23
    %s162 = scalar_lea.vmem [#allocation4], %s161
    %v163 = vld [vmem:[%s162] sm:$0x1]
    %165 = vrot.lane.b32.xlu0 %v163, 64
    %v166 = vpop.permute.xlu0 %165
    %168 = vst.msk [vmem:[#allocation7 + $0x2] sm:$0x1] %vm70, %v166
    %s169 = sadd.s32 %s34, 11
    %s170 = sld [smem:[#allocation3 + %s169]]
    %p171 = scmp.gt.s32.totalorder %s170, 0
    %s172 = scalar_select %p171, %s170, 0
    %p173 = scmp.lt.s32.totalorder %s172, 23
    %s174 = scalar_select %p173, %s172, 23
    %s175 = scalar_lea.vmem [#allocation4], %s174
    %v176 = vld [vmem:[%s175] sm:$0x1]
    %178 = vrot.lane.b32.xlu0 %v176, 96
    %v179 = vpop.permute.xlu0 %178
    %181 = vst.msk [vmem:[#allocation7 + $0x2] sm:$0x1] %vm84, %v179
    %s182 = sadd.s32 %s34, 12
    %s183 = sld [smem:[#allocation3 + %s182]]
    %p184 = scmp.gt.s32.totalorder %s183, 0
    %s185 = scalar_select %p184, %s183, 0
    %p186 = scmp.lt.s32.totalorder %s185, 23
    %s187 = scalar_select %p186, %s185, 23
    %s188 = scalar_lea.vmem [#allocation4], %s187
    %v189 = vld [vmem:[%s188] sm:$0x1]
    %190 = vst.msk [vmem:[#allocation7 + $0x3] sm:$0x1] %vm42, %v189
    %s191 = sadd.s32 %s34, 13
    %s192 = sld [smem:[#allocation3 + %s191]]
    %p193 = scmp.gt.s32.totalorder %s192, 0
    %s194 = scalar_select %p193, %s192, 0
    %p195 = scmp.lt.s32.totalorder %s194, 23
    %s196 = scalar_select %p195, %s194, 23
    %s197 = scalar_lea.vmem [#allocation4], %s196
    %v198 = vld [vmem:[%s197] sm:$0x1]
    %200 = vrot.lane.b32.xlu0 %v198, 32
    %v201 = vpop.permute.xlu0 %200
    %203 = vst.msk [vmem:[#allocation7 + $0x3] sm:$0x1] %vm56, %v201
    %s204 = sadd.s32 %s34, 14
    %s205 = sld [smem:[#allocation3 + %s204]]
    %p206 = scmp.gt.s32.totalorder %s205, 0
    %s207 = scalar_select %p206, %s205, 0
    %p208 = scmp.lt.s32.totalorder %s207, 23
    %s209 = scalar_select %p208, %s207, 23
    %s210 = scalar_lea.vmem [#allocation4], %s209
    %v211 = vld [vmem:[%s210] sm:$0x1]
    %213 = vrot.lane.b32.xlu0 %v211, 64
    %v214 = vpop.permute.xlu0 %213
    %216 = vst.msk [vmem:[#allocation7 + $0x3] sm:$0x1] %vm70, %v214
    %s217 = sadd.s32 %s34, 15
    %s218 = sld [smem:[#allocation3 + %s217]]
    %p219 = scmp.gt.s32.totalorder %s218, 0
    %s220 = scalar_select %p219, %s218, 0
    %p221 = scmp.lt.s32.totalorder %s220, 23
    %s222 = scalar_select %p221, %s220, 23
    %s223 = scalar_lea.vmem [#allocation4], %s222
    %v224 = vld [vmem:[%s223] sm:$0x1]
    %226 = vrot.lane.b32.xlu0 %v224, 96
    %v227 = vpop.permute.xlu0 %226
    %229 = vst.msk [vmem:[#allocation7 + $0x3] sm:$0x1] %vm84, %v227
    %s230 = sadd.s32 %s34, 16
    %s231 = sld [smem:[#allocation3 + %s230]]
    %p232 = scmp.gt.s32.totalorder %s231, 0
    %s233 = scalar_select %p232, %s231, 0
    %p234 = scmp.lt.s32.totalorder %s233, 23
    %s235 = scalar_select %p234, %s233, 23
    %s236 = scalar_lea.vmem [#allocation4], %s235
    %v237 = vld [vmem:[%s236] sm:$0x1]
    %238 = vst.msk [vmem:[#allocation7 + $0x4] sm:$0x1] %vm42, %v237
    %s239 = sadd.s32 %s34, 17
    %s240 = sld [smem:[#allocation3 + %s239]]
    %p241 = scmp.gt.s32.totalorder %s240, 0
    %s242 = scalar_select %p241, %s240, 0
    %p243 = scmp.lt.s32.totalorder %s242, 23
    %s244 = scalar_select %p243, %s242, 23
    %s245 = scalar_lea.vmem [#allocation4], %s244
    %v246 = vld [vmem:[%s245] sm:$0x1]
    %248 = vrot.lane.b32.xlu0 %v246, 32
    %v249 = vpop.permute.xlu0 %248
    %251 = vst.msk [vmem:[#allocation7 + $0x4] sm:$0x1] %vm56, %v249
    %s252 = sadd.s32 %s34, 18
    %s253 = sld [smem:[#allocation3 + %s252]]
    %p254 = scmp.gt.s32.totalorder %s253, 0
    %s255 = scalar_select %p254, %s253, 0
    %p256 = scmp.lt.s32.totalorder %s255, 23
    %s257 = scalar_select %p256, %s255, 23
    %s258 = scalar_lea.vmem [#allocation4], %s257
    %v259 = vld [vmem:[%s258] sm:$0x1]
    %261 = vrot.lane.b32.xlu0 %v259, 64
    %v262 = vpop.permute.xlu0 %261
    %264 = vst.msk [vmem:[#allocation7 + $0x4] sm:$0x1] %vm70, %v262
    %s265 = sadd.s32 %s34, 19
    %s266 = sld [smem:[#allocation3 + %s265]]
    %p267 = scmp.gt.s32.totalorder %s266, 0
    %s268 = scalar_select %p267, %s266, 0
    %p269 = scmp.lt.s32.totalorder %s268, 23
    %s270 = scalar_select %p269, %s268, 23
    %s271 = scalar_lea.vmem [#allocation4], %s270
    %v272 = vld [vmem:[%s271] sm:$0x1]
    %274 = vrot.lane.b32.xlu0 %v272, 96
    %v275 = vpop.permute.xlu0 %274
    %277 = vst.msk [vmem:[#allocation7 + $0x4] sm:$0x1] %vm84, %v275
    %s278 = sadd.s32 %s34, 20
    %s279 = sld [smem:[#allocation3 + %s278]]
    %p280 = scmp.gt.s32.totalorder %s279, 0
    %s281 = scalar_select %p280, %s279, 0
    %p282 = scmp.lt.s32.totalorder %s281, 23
    %s283 = scalar_select %p282, %s281, 23
    %s284 = scalar_lea.vmem [#allocation4], %s283
    %v285 = vld [vmem:[%s284] sm:$0x1]
    %286 = vst.msk [vmem:[#allocation7 + $0x5] sm:$0x1] %vm42, %v285
    %s287 = sadd.s32 %s34, 21
    %s288 = sld [smem:[#allocation3 + %s287]]
    %p289 = scmp.gt.s32.totalorder %s288, 0
    %s290 = scalar_select %p289, %s288, 0
    %p291 = scmp.lt.s32.totalorder %s290, 23
    %s292 = scalar_select %p291, %s290, 23
    %s293 = scalar_lea.vmem [#allocation4], %s292
    %v294 = vld [vmem:[%s293] sm:$0x1]
    %296 = vrot.lane.b32.xlu0 %v294, 32
    %v297 = vpop.permute.xlu0 %296
    %299 = vst.msk [vmem:[#allocation7 + $0x5] sm:$0x1] %vm56, %v297
    %s300 = sadd.s32 %s34, 22
    %s301 = sld [smem:[#allocation3 + %s300]]
    %p302 = scmp.gt.s32.totalorder %s301, 0
    %s303 = scalar_select %p302, %s301, 0
    %p304 = scmp.lt.s32.totalorder %s303, 23
    %s305 = scalar_select %p304, %s303, 23
    %s306 = scalar_lea.vmem [#allocation4], %s305
    %v307 = vld [vmem:[%s306] sm:$0x1]
    %309 = vrot.lane.b32.xlu0 %v307, 64
    %v310 = vpop.permute.xlu0 %309
    %312 = vst.msk [vmem:[#allocation7 + $0x5] sm:$0x1] %vm70, %v310
    %s313 = sadd.s32 %s34, 23
    %s314 = sld [smem:[#allocation3 + %s313]]
    %p315 = scmp.gt.s32.totalorder %s314, 0
    %s316 = scalar_select %p315, %s314, 0
    %p317 = scmp.lt.s32.totalorder %s316, 23
    %s318 = scalar_select %p317, %s316, 23
    %s319 = scalar_lea.vmem [#allocation4], %s318
    %v320 = vld [vmem:[%s319] sm:$0x1]
    %322 = vrot.lane.b32.xlu0 %v320, 96
    %v323 = vpop.permute.xlu0 %322
    %325 = vst.msk [vmem:[#allocation7 + $0x5] sm:$0x1] %vm84, %v323
    %s326 = sadd.s32 %s34, 24
    %s327 = sld [smem:[#allocation3 + %s326]]
    %p328 = scmp.gt.s32.totalorder %s327, 0
    %s329 = scalar_select %p328, %s327, 0
    %p330 = scmp.lt.s32.totalorder %s329, 23
    %s331 = scalar_select %p330, %s329, 23
    %s332 = scalar_lea.vmem [#allocation4], %s331
    %v333 = vld [vmem:[%s332] sm:$0x1]
    %334 = vst.msk [vmem:[#allocation7 + $0x6] sm:$0x1] %vm42, %v333
    %s335 = sadd.s32 %s34, 25
    %s336 = sld [smem:[#allocation3 + %s335]]
    %p337 = scmp.gt.s32.totalorder %s336, 0
    %s338 = scalar_select %p337, %s336, 0
    %p339 = scmp.lt.s32.totalorder %s338, 23
    %s340 = scalar_select %p339, %s338, 23
    %s341 = scalar_lea.vmem [#allocation4], %s340
    %v342 = vld [vmem:[%s341] sm:$0x1]
    %344 = vrot.lane.b32.xlu0 %v342, 32
    %v345 = vpop.permute.xlu0 %344
    %347 = vst.msk [vmem:[#allocation7 + $0x6] sm:$0x1] %vm56, %v345
    %s348 = sadd.s32 %s34, 26
    %s349 = sld [smem:[#allocation3 + %s348]]
    %p350 = scmp.gt.s32.totalorder %s349, 0
    %s351 = scalar_select %p350, %s349, 0
    %p352 = scmp.lt.s32.totalorder %s351, 23
    %s353 = scalar_select %p352, %s351, 23
    %s354 = scalar_lea.vmem [#allocation4], %s353
    %v355 = vld [vmem:[%s354] sm:$0x1]
    %357 = vrot.lane.b32.xlu0 %v355, 64
    %v358 = vpop.permute.xlu0 %357
    %360 = vst.msk [vmem:[#allocation7 + $0x6] sm:$0x1] %vm70, %v358
    %s361 = sadd.s32 %s34, 27
    %s362 = sld [smem:[#allocation3 + %s361]]
    %p363 = scmp.gt.s32.totalorder %s362, 0
    %s364 = scalar_select %p363, %s362, 0
    %p365 = scmp.lt.s32.totalorder %s364, 23
    %s366 = scalar_select %p365, %s364, 23
    %s367 = scalar_lea.vmem [#allocation4], %s366
    %v368 = vld [vmem:[%s367] sm:$0x1]
    %370 = vrot.lane.b32.xlu0 %v368, 96
    %v371 = vpop.permute.xlu0 %370
    %373 = vst.msk [vmem:[#allocation7 + $0x6] sm:$0x1] %vm84, %v371
    %s374 = sadd.s32 %s34, 28
    %s375 = sld [smem:[#allocation3 + %s374]]
    %p376 = scmp.gt.s32.totalorder %s375, 0
    %s377 = scalar_select %p376, %s375, 0
    %p378 = scmp.lt.s32.totalorder %s377, 23
    %s379 = scalar_select %p378, %s377, 23
    %s380 = scalar_lea.vmem [#allocation4], %s379
    %v381 = vld [vmem:[%s380] sm:$0x1]
    %382 = vst.msk [vmem:[#allocation7 + $0x7] sm:$0x1] %vm42, %v381
    %s383 = sadd.s32 %s34, 29
    %s384 = sld [smem:[#allocation3 + %s383]]
    %p385 = scmp.gt.s32.totalorder %s384, 0
    %s386 = scalar_select %p385, %s384, 0
    %p387 = scmp.lt.s32.totalorder %s386, 23
    %s388 = scalar_select %p387, %s386, 23
    %s389 = scalar_lea.vmem [#allocation4], %s388
    %v390 = vld [vmem:[%s389] sm:$0x1]
    %392 = vrot.lane.b32.xlu0 %v390, 32
    %v393 = vpop.permute.xlu0 %392
    %395 = vst.msk [vmem:[#allocation7 + $0x7] sm:$0x1] %vm56, %v393
    %s396 = sadd.s32 %s34, 30
    %s397 = sld [smem:[#allocation3 + %s396]]
    %p398 = scmp.gt.s32.totalorder %s397, 0
    %s399 = scalar_select %p398, %s397, 0
    %p400 = scmp.lt.s32.totalorder %s399, 23
    %s401 = scalar_select %p400, %s399, 23
    %s402 = scalar_lea.vmem [#allocation4], %s401
    %v403 = vld [vmem:[%s402] sm:$0x1]
    %405 = vrot.lane.b32.xlu0 %v403, 64
    %v406 = vpop.permute.xlu0 %405
    %408 = vst.msk [vmem:[#allocation7 + $0x7] sm:$0x1] %vm70, %v406
    %s409 = sadd.s32 %s34, 31
    %s410 = sld [smem:[#allocation3 + %s409]]
    %p411 = scmp.gt.s32.totalorder %s410, 0
    %s412 = scalar_select %p411, %s410, 0
    %p413 = scmp.lt.s32.totalorder %s412, 23
    %s414 = scalar_select %p413, %s412, 23
    %s415 = scalar_lea.vmem [#allocation4], %s414
    %v416 = vld [vmem:[%s415] sm:$0x1]
    %418 = vrot.lane.b32.xlu0 %v416, 96
    %v419 = vpop.permute.xlu0 %418
    %421 = vst.msk [vmem:[#allocation7 + $0x7] sm:$0x1] %vm84, %v419
    // Predicated region
    $region10: #{tpu_custom_call.1} parent=1 // pred_check
      _
    $region11: #{tpu_custom_call.1} parent=1 // pred_check_branch
      %423 = sbr.rel (0) target = $region13
    $region12: #{tpu_custom_call.1} parent=1 // pred_region
      %425 = vsyncadd [#allocation6], 0
      %s427 = sshll.u32 [#allocation7], 4
      %s428 = int_to_ptr.vmem [resolvable:$true] %s427
      %s429 = sshll.u32 %s2, 4
      %s430 = int_to_ptr.hbm [resolvable:$true] %s429
      %432 = dma.vmem_to_hbm [thread:$0]  %s428, 128, %s430, [#allocation6]
    $region13: #{tpu_custom_call.1} parent=1 // pred_fallthru
      _
    // Predicated region
    $region14: #{tpu_custom_call.1} parent=1 // pred_check
      _
    $region15: #{tpu_custom_call.1} parent=1 // pred_check_branch
      %434 = sbr.rel (0) target = $region17
    $region16: #{tpu_custom_call.1} parent=1 // pred_region
      %436 = dma.done [#allocation6], 128
    $region17: #{tpu_custom_call.1} parent=1 // pred_fallthru
      _
    %437 = vsyncpa [#allocation5], 1
    %438 = vsyncpa [#allocation6], 1

</llo_original>
